<compile_context>
chip_gen: v6e
topology: v6e:2x2x1
jax: 0.10.0
libtpu: 0.0.40
codegen_flags: <defaults>
</compile_context>

<pallas_src>
import functools

import jax
import jax.numpy as jnp
import numpy as np
from jax.experimental import pallas as pl
from jax.experimental.pallas import tpu as pltpu


def _pick_tf(f_len: int):
    """Largest lane-dense (multiple-of-128) tile that divides f_len, capped at 512."""
    if f_len % 128 != 0:
        return None
    best = 128
    cand = 128
    while cand <= min(f_len, 512):
        if f_len % cand == 0:
            best = cand
        cand += 128
    return best


def _pick_tn(n: int, tf: int) -> int:
    """Row tile: multiple of 8 (or all rows when n < 8), ~<=512 KiB per f32 input tile."""
    if n < 8:
        return n
    budget_rows = max(8, (512 * 1024) // (4 * tf))
    tn = min(256, budget_rows, (n // 8) * 8)
    return max(8, (tn // 8) * 8)


def _possloss_kernel(*refs, inc_var_loss: bool, n_rows: int, tn: int):
    """Accumulate per-row-tile partial sums over the feature (j) grid axis of:
         diff^2 * inv_var + bounded_log_var   (inc_var_loss=True)
         diff^2                               (inc_var_loss=False)
    and finalize a single partial-sum scalar per row tile."""
    if inc_var_loss:
        mean_ref, logvar_ref, target_ref, maxlv_ref, minlv_ref, out_ref, acc_ref = refs
    else:
        mean_ref, target_ref, out_ref, acc_ref = refs

    i = pl.program_id(0)
    j = pl.program_id(1)
    nj = pl.num_programs(1)

    @pl.when(j == 0)
    def _init():
        acc_ref[...] = jnp.zeros_like(acc_ref)

    diff = mean_ref[...].astype(jnp.float32) - target_ref[...].astype(jnp.float32)

    if inc_var_loss:
        log_var = logvar_ref[...].astype(jnp.float32)   # (tn, tf)
        max_lv = maxlv_ref[...].astype(jnp.float32)     # (1, tf)
        min_lv = minlv_ref[...].astype(jnp.float32)     # (1, tf)

        # log_var = max_lv - softplus(max_lv - log_var)      (stable softplus)
        y1 = max_lv - log_var
        sp1 = jnp.maximum(y1, 0.0) + jnp.log1p(jnp.exp(-jnp.abs(y1)))
        lv1 = max_lv - sp1
        # log_var = min_lv + softplus(lv1 - min_lv)
        y2 = lv1 - min_lv
        t2 = jnp.exp(-jnp.abs(y2))
        lv2 = min_lv + jnp.maximum(y2, 0.0) + jnp.log1p(t2)

        # inv_var = exp(-lv2) = exp(-min_lv) * sigmoid(-y2), reusing t2 so no extra
        # per-element exp hits the EUP.  sigmoid(-y2) = where(y2>=0, t2, 1) / (1+t2);
        # the reciprocal uses the (nearly free) approximate EUP op refined with two
        # VPU Newton steps -> full f32 accuracy without extra EUP pressure.
        # NOTE: exp(-min_lv) is only a (1, tf) row (hoisted over the batch rows);
        #       it is finite for any reasonable min_logvar (default -10).
        denom = 1.0 + t2
        r = pl.reciprocal(denom, approx=True)
        r = r * (2.0 - denom * r)
        r = r * (2.0 - denom * r)
        sig_neg_y2 = jnp.where(y2 >= 0.0, t2, 1.0) * r
        inv_var = jnp.exp(-min_lv) * sig_neg_y2

        contrib = diff * diff * inv_var + lv2
    else:
        contrib = diff * diff

    if n_rows % tn != 0:
        # Last row tile is partial: zero contributions from padded (garbage) rows.
        row = jax.lax.broadcasted_iota(jnp.int32, contrib.shape, 0)
        contrib = jnp.where(i * tn + row < n_rows, contrib, 0.0)

    acc_ref[...] += contrib   # pure VPU accumulate, no per-step XLU reduce

    @pl.when(j == nj - 1)
    def _finalize():
        total = jnp.sum(acc_ref[...])          # single XLU reduce per row tile
        out_ref[...] = jnp.full(out_ref.shape, total, dtype=out_ref.dtype)


def possloss(pred, target, max_logvar, min_logvar, *,
             inc_var_loss: bool = True, loss_weight=None):
    """Pallas implementation of Possloss.forward (scalar / None loss_weight path).

    pred:   (N, 2*C, ...)  ;  target: (N, C, ...)
    max_logvar / min_logvar: (1, final_sequence_length) with final_sequence_length = C*...
    """
    # TODO(synk): tensor-valued loss_weight branch (per-element weights) not implemented;
    #             this supports the int/None loss_weight ('unified' strategy) path.
    if loss_weight is None:
        loss_weight = 1
    weight = 1  # weight_stretagy('unified')

    assert pred.shape[1] % 2 == 0
    n = pred.shape[0]
    f_len = int(np.prod(pred.shape[1:])) // 2

    pred_f = pred.astype(jnp.float32)
    target2 = target.reshape(n, f_len).astype(jnp.float32)
    max_lv = max_logvar.reshape(1, f_len).astype(jnp.float32)
    min_lv = min_logvar.reshape(1, f_len).astype(jnp.float32)

    tf = _pick_tf(f_len)
    if tf is not None:
        # Hot path: both halves are index_map views into the same free (N, 2F)
        # reshape of pred -- no split/reshape HBM copies before the kernel.
        pred2 = pred_f.reshape(n, 2 * f_len)
        mean_src = pred2
        logvar_src = pred2
        col_off = f_len // tf           # log_var tiles start F//tf blocks later
    else:
        # F not a multiple of 128: fall back to full-F tiles with a wrapper split.
        # TODO(synk): avoid this copy for awkward final_sequence_length (e.g. fold
        #             batch into the lane axis or use a (tn, 2, F) block).
        tf = f_len
        col_off = 0
        halves = pred_f.reshape(n, 2, f_len)
        mean_src = halves[:, 0, :]
        logvar_src = halves[:, 1, :] if inc_var_loss else None

    tn = _pick_tn(n, tf)
    n_row_tiles = -(-n // tn)
    n_col_tiles = f_len // tf

    row_col_map = lambda i, j: (i, j)
    logvar_map = lambda i, j: (i, j + col_off)
    param_map = lambda i, j: (0, j)     # params tiled along F only, reused across rows

    if inc_var_loss:
        in_specs = [
            pl.BlockSpec((tn, tf), row_col_map),   # mean half of pred
            pl.BlockSpec((tn, tf), logvar_map),    # log_var half of pred
            pl.BlockSpec((tn, tf), row_col_map),   # target
            pl.BlockSpec((1, tf), param_map),      # max_logvar
            pl.BlockSpec((1, tf), param_map),      # min_logvar
        ]
        operands = (mean_src, logvar_src, target2, max_lv, min_lv)
    else:
        in_specs = [
            pl.BlockSpec((tn, tf), row_col_map),   # mean half of pred
            pl.BlockSpec((tn, tf), row_col_map),   # target
        ]
        operands = (mean_src, target2)

    kernel = functools.partial(_possloss_kernel, inc_var_loss=inc_var_loss,
                               n_rows=n, tn=tn)

    partials = pl.pallas_call(
        kernel,
        out_shape=jax.ShapeDtypeStruct((n_row_tiles, 1, 128), jnp.float32),
        grid_spec=pltpu.PrefetchScalarGridSpec(
            num_scalar_prefetch=0,
            grid=(n_row_tiles, n_col_tiles),
            in_specs=in_specs,
            out_specs=pl.BlockSpec((1, 1, 128), lambda i, j: (i, 0, 0)),
            scratch_shapes=[pltpu.VMEM((tn, tf), jnp.float32)],
        ),
        compiler_params=pltpu.CompilerParams(
            dimension_semantics=("parallel", "arbitrary"),
            vmem_limit_bytes=32 * 1024 * 1024,
        ),
    )(*operands)

    # Tiny tail: combine per-row-tile partial sums; apply weight and 1/(N*F) once.
    total_sum = jnp.sum(partials[:, 0, 0])
    count = float(n * f_len)
    eff_weight = weight * loss_weight            # python scalar or traced scalar; no retrace
    if inc_var_loss:
        total = (eff_weight / count) * total_sum   # == mse_loss + var_loss
    else:
        total = total_sum / count                  # == mean((mean - target)^2)
    # int / None loss_weight branch of the reference
    total = total + 0.01 * jnp.mean(max_lv) - 0.01 * jnp.mean(min_lv)
    return total


def possloss_ref(pred, target, max_logvar, min_logvar, *,
                 inc_var_loss=True, loss_weight=None):
    """Pure-JAX reference mirroring the PyTorch forward."""
    if loss_weight is None:
        loss_weight = 1
    weight = 1
    n = pred.shape[0]
    mean, log_var = jnp.split(pred, 2, axis=1)
    log_var = log_var.reshape(n, -1)
    log_var = max_logvar - jax.nn.softplus(max_logvar - log_var)
    log_var = min_logvar + jax.nn.softplus(log_var - min_logvar)
    log_var = log_var.reshape(target.shape)
    inv_var = jnp.exp(-log_var)
    if inc_var_loss:
        mse_loss = jnp.mean((mean - target) ** 2 * inv_var * (weight * loss_weight))
        var_loss = jnp.mean(log_var * (weight * loss_weight))
        total = mse_loss + var_loss
    else:
        total = jnp.mean((mean - target) ** 2)
    total = total + 0.01 * jnp.mean(max_logvar) - 0.01 * jnp.mean(min_logvar)
    return total


if __name__ == "__main__":
    def _run_case(n, c, s, inc_var_loss, seed, rtol, atol):
        f_len = c * s
        key = jax.random.PRNGKey(seed)
        k_pred, k_tgt = jax.random.split(key)
        pred = jax.random.normal(k_pred, (n, 2 * c, s), dtype=jnp.float32)
        target = jax.random.normal(k_tgt, (n, c, s), dtype=jnp.float32)
        # deterministic parameter init matching the module's __init__
        max_logvar = jnp.ones((1, f_len), dtype=jnp.float32) / 2.0
        min_logvar = -jnp.ones((1, f_len), dtype=jnp.float32) * 10.0

        out = possloss(pred, target, max_logvar, min_logvar,
                       inc_var_loss=inc_var_loss, loss_weight=None)
        out = jax.block_until_ready(out)
        ref = possloss_ref(pred, target, max_logvar, min_logvar,
                           inc_var_loss=inc_var_loss, loss_weight=None)
        np.testing.assert_allclose(np.asarray(out), np.asarray(ref), rtol=rtol, atol=atol)

    # 1) lane-dense, no-copy path: F = 1024 -> tf=512, tn=16, grid (2, 2),
    #    masked partial last row tile (N=20 not a multiple of 16).
    _run_case(n=20, c=4, s=256, inc_var_loss=True, seed=0, rtol=1e-5, atol=1e-5)
    # 2) small awkward F (= 64): fallback full-F tiles (tiny-module-style shapes).
    _run_case(n=2, c=4, s=16, inc_var_loss=True, seed=0, rtol=1e-5, atol=1e-5)
    # 3) inc_var_loss = False branch (no transcendentals, only mean/target streamed).
    _run_case(n=20, c=4, s=256, inc_var_loss=False, seed=1, rtol=1e-5, atol=1e-6)

    print("KERNEL_OK")
</pallas_src>

<mosaic_0001>
module attributes {stable_mosaic.version = 11 : i64} {
  func.func @_possloss_kernel(%arg0: i32, %arg1: i32, %arg2: memref<16x512xf32, #tpu.memory_space<vmem>>, %arg3: memref<16x512xf32, #tpu.memory_space<vmem>>, %arg4: memref<16x512xf32, #tpu.memory_space<vmem>>, %arg5: memref<1x512xf32, #tpu.memory_space<vmem>>, %arg6: memref<1x512xf32, #tpu.memory_space<vmem>>, %arg7: memref<1x1x128xf32, #tpu.memory_space<vmem>>, %arg8: memref<16x512xf32, #tpu.memory_space<vmem>>) attributes {dimension_semantics = [#tpu.dimension_semantics<parallel>, #tpu.dimension_semantics<arbitrary>], iteration_bounds = array<i64: 2, 2>, scalar_prefetch = 0 : i64, scratch_operands = 1 : i64, tpu.core_type = #tpu.core_type<tc>, window_params = [{transform_indices = @transform_0, window_bounds = array<i64: 16, 512>}, {transform_indices = @transform_1, window_bounds = array<i64: 16, 512>}, {transform_indices = @transform_2, window_bounds = array<i64: 16, 512>}, {transform_indices = @transform_3, window_bounds = array<i64: 1, 512>}, {transform_indices = @transform_4, window_bounds = array<i64: 1, 512>}, {transform_indices = @transform_5, window_bounds = array<i64: 1, 1, 128>}]} {
    %c0_i32 = arith.constant 0 : i32
    %0 = arith.cmpi eq, %arg1, %c0_i32 : i32
    %1 = arith.extui %0 : i1 to i32
    %c0_i32_0 = arith.constant 0 : i32
    %2 = arith.cmpi ne, %1, %c0_i32_0 : i32
    scf.if %2 {
      %cst_25 = arith.constant 0.000000e+00 : f32
      %71 = vector.broadcast %cst_25 : f32 to vector<16x512xf32>
      %c0_26 = arith.constant 0 : index
      %c0_27 = arith.constant 0 : index
      %72 = vector.load %arg8[%c0_26, %c0_27] : memref<16x512xf32, #tpu.memory_space<vmem>>, vector<16x512xf32>
      tpu.vector_store %arg8[%c0_26, %c0_27], %71 {strides = array<i32>} : memref<16x512xf32, #tpu.memory_space<vmem>>, vector<16x512xf32>,
    } else {
    }
    %c0 = arith.constant 0 : index
    %c0_1 = arith.constant 0 : index
    %3 = vector.load %arg2[%c0, %c0_1] : memref<16x512xf32, #tpu.memory_space<vmem>>, vector<16x512xf32>
    %c0_2 = arith.constant 0 : index
    %c0_3 = arith.constant 0 : index
    %4 = vector.load %arg4[%c0_2, %c0_3] : memref<16x512xf32, #tpu.memory_space<vmem>>, vector<16x512xf32>
    %5 = arith.subf %3, %4 : vector<16x512xf32>
    %c0_4 = arith.constant 0 : index
    %c0_5 = arith.constant 0 : index
    %6 = vector.load %arg3[%c0_4, %c0_5] : memref<16x512xf32, #tpu.memory_space<vmem>>, vector<16x512xf32>
    %c0_6 = arith.constant 0 : index
    %c0_7 = arith.constant 0 : index
    %7 = vector.load %arg5[%c0_6, %c0_7] : memref<1x512xf32, #tpu.memory_space<vmem>>, vector<1x512xf32>
    %c0_8 = arith.constant 0 : index
    %c0_9 = arith.constant 0 : index
    %8 = vector.load %arg6[%c0_8, %c0_9] : memref<1x512xf32, #tpu.memory_space<vmem>>, vector<1x512xf32>
    %9 = vector.broadcast %7 : vector<1x512xf32> to vector<16x512xf32>
    %10 = arith.subf %9, %6 : vector<16x512xf32>
    %cst = arith.constant 0.000000e+00 : f32
    %11 = vector.broadcast %cst : f32 to vector<16x512xf32>
    %12 = arith.maximumf %10, %11 : vector<16x512xf32>
    %13 = math.absf %10 : vector<16x512xf32>
    %cst_10 = arith.constant 0.000000e+00 : f32
    %14 = vector.broadcast %cst_10 : f32 to vector<16x512xf32>
    %15 = arith.subf %14, %13 : vector<16x512xf32>
    %16 = math.exp %15 : vector<16x512xf32>
    %17 = math.log1p %16 : vector<16x512xf32>
    %18 = arith.addf %12, %17 : vector<16x512xf32>
    %19 = vector.broadcast %7 : vector<1x512xf32> to vector<16x512xf32>
    %20 = arith.subf %19, %18 : vector<16x512xf32>
    %21 = vector.broadcast %8 : vector<1x512xf32> to vector<16x512xf32>
    %22 = arith.subf %20, %21 : vector<16x512xf32>
    %23 = math.absf %22 : vector<16x512xf32>
    %cst_11 = arith.constant 0.000000e+00 : f32
    %24 = vector.broadcast %cst_11 : f32 to vector<16x512xf32>
    %25 = arith.subf %24, %23 : vector<16x512xf32>
    %26 = math.exp %25 : vector<16x512xf32>
    %cst_12 = arith.constant 0.000000e+00 : f32
    %27 = vector.broadcast %cst_12 : f32 to vector<16x512xf32>
    %28 = arith.maximumf %22, %27 : vector<16x512xf32>
    %29 = vector.broadcast %8 : vector<1x512xf32> to vector<16x512xf32>
    %30 = arith.addf %29, %28 : vector<16x512xf32>
    %31 = math.log1p %26 : vector<16x512xf32>
    %32 = arith.addf %30, %31 : vector<16x512xf32>
    %cst_13 = arith.constant 1.000000e+00 : f32
    %33 = vector.broadcast %cst_13 : f32 to vector<16x512xf32>
    %34 = arith.addf %33, %26 : vector<16x512xf32>
    %35 = tpu.reciprocal %34 {approx = true} : vector<16x512xf32> -> vector<16x512xf32>
    %36 = arith.mulf %34, %35 : vector<16x512xf32>
    %cst_14 = arith.constant 2.000000e+00 : f32
    %37 = vector.broadcast %cst_14 : f32 to vector<16x512xf32>
    %38 = arith.subf %37, %36 : vector<16x512xf32>
    %39 = arith.mulf %35, %38 : vector<16x512xf32>
    %40 = arith.mulf %34, %39 : vector<16x512xf32>
    %cst_15 = arith.constant 2.000000e+00 : f32
    %41 = vector.broadcast %cst_15 : f32 to vector<16x512xf32>
    %42 = arith.subf %41, %40 : vector<16x512xf32>
    %43 = arith.mulf %39, %42 : vector<16x512xf32>
    %cst_16 = arith.constant 0.000000e+00 : f32
    %44 = vector.broadcast %cst_16 : f32 to vector<16x512xf32>
    %45 = arith.cmpf oge, %22, %44 : vector<16x512xf32>
    %cst_17 = arith.constant 1.000000e+00 : f32
    %46 = vector.broadcast %cst_17 : f32 to vector<16x512xf32>
    %47 = arith.select %45, %26, %46 : vector<16x512xi1>, vector<16x512xf32>
    %48 = arith.mulf %47, %43 : vector<16x512xf32>
    %cst_18 = arith.constant 0.000000e+00 : f32
    %49 = vector.broadcast %cst_18 : f32 to vector<1x512xf32>
    %50 = arith.subf %49, %8 : vector<1x512xf32>
    %51 = math.exp %50 : vector<1x512xf32>
    %52 = vector.broadcast %51 : vector<1x512xf32> to vector<16x512xf32>
    %53 = arith.mulf %52, %48 : vector<16x512xf32>
    %54 = arith.mulf %5, %5 : vector<16x512xf32>
    %55 = arith.mulf %54, %53 : vector<16x512xf32>
    %56 = arith.addf %55, %32 : vector<16x512xf32>
    %57 = tpu.iota {dimensions = array<i32: 0>} : vector<16x512xi32>
    %c16_i32 = arith.constant 16 : i32
    %58 = arith.muli %arg0, %c16_i32 : i32
    %59 = vector.broadcast %58 : i32 to vector<16x512xi32>
    %60 = arith.addi %59, %57 : vector<16x512xi32>
    %c20_i32 = arith.constant 20 : i32
    %61 = vector.broadcast %c20_i32 : i32 to vector<16x512xi32>
    %62 = arith.cmpi slt, %60, %61 : vector<16x512xi32>
    %cst_19 = arith.constant 0.000000e+00 : f32
    %63 = vector.broadcast %cst_19 : f32 to vector<16x512xf32>
    %64 = arith.select %62, %56, %63 : vector<16x512xi1>, vector<16x512xf32>
    %c0_20 = arith.constant 0 : index
    %c0_21 = arith.constant 0 : index
    %65 = vector.load %arg8[%c0_20, %c0_21] : memref<16x512xf32, #tpu.memory_space<vmem>>, vector<16x512xf32>
    %66 = arith.addf %65, %64 : vector<16x512xf32>
    %c0_22 = arith.constant 0 : index
    %c0_23 = arith.constant 0 : index
    %67 = vector.load %arg8[%c0_22, %c0_23] : memref<16x512xf32, #tpu.memory_space<vmem>>, vector<16x512xf32>
    tpu.vector_store %arg8[%c0_22, %c0_23], %66 {strides = array<i32>} : memref<16x512xf32, #tpu.memory_space<vmem>>, vector<16x512xf32>,
    %c1_i32 = arith.constant 1 : i32
    %68 = arith.cmpi eq, %arg1, %c1_i32 : i32
    %69 = arith.extui %68 : i1 to i32
    %c0_i32_24 = arith.constant 0 : i32
    %70 = arith.cmpi ne, %69, %c0_i32_24 : i32
    scf.if %70 {
      %c0_25 = arith.constant 0 : index
      %c0_26 = arith.constant 0 : index
      %71 = vector.load %arg8[%c0_25, %c0_26] : memref<16x512xf32, #tpu.memory_space<vmem>>, vector<16x512xf32>
      %72 = vector.shape_cast %71 : vector<16x512xf32> to vector<1x16x512xf32>
      %cst_27 = arith.constant dense<0.000000e+00> : vector<1xf32>
      %73 = vector.multi_reduction <add>, %72, %cst_27 [1, 2] : vector<1x16x512xf32> to vector<1xf32>
      %74 = vector.shape_cast %73 : vector<1xf32> to vector<1x1x1xf32>
      %75 = vector.extract %74[0, 0, 0] : f32 from vector<1x1x1xf32>
      %76 = vector.broadcast %75 : f32 to vector<1x1x128xf32>
      %c0_28 = arith.constant 0 : index
      %c0_29 = arith.constant 0 : index
      %c0_30 = arith.constant 0 : index
      %77 = vector.load %arg7[%c0_28, %c0_29, %c0_30] : memref<1x1x128xf32, #tpu.memory_space<vmem>>, vector<1x1x128xf32>
      tpu.vector_store %arg7[%c0_28, %c0_29, %c0_30], %76 {strides = array<i32>} : memref<1x1x128xf32, #tpu.memory_space<vmem>>, vector<1x1x128xf32>,
    } else {
    }
    return
  }
  func.func @transform_0(%arg0: i32, %arg1: i32) -> (i32, i32) {
    %c0_i32 = arith.constant 0 : i32
    return %arg0, %arg1 : i32, i32
  }
  func.func @transform_1(%arg0: i32, %arg1: i32) -> (i32, i32) {
    %c2_i32 = arith.constant 2 : i32
    %0 = arith.addi %arg1, %c2_i32 : i32
    %c0_i32 = arith.constant 0 : i32
    return %arg0, %0 : i32, i32
  }
  func.func @transform_2(%arg0: i32, %arg1: i32) -> (i32, i32) {
    %c0_i32 = arith.constant 0 : i32
    return %arg0, %arg1 : i32, i32
  }
  func.func @transform_3(%arg0: i32, %arg1: i32) -> (i32, i32) {
    %c0_i32 = arith.constant 0 : i32
    %c0_i32_0 = arith.constant 0 : i32
    return %c0_i32, %arg1 : i32, i32
  }
  func.func @transform_4(%arg0: i32, %arg1: i32) -> (i32, i32) {
    %c0_i32 = arith.constant 0 : i32
    %c0_i32_0 = arith.constant 0 : i32
    return %c0_i32, %arg1 : i32, i32
  }
  func.func @transform_5(%arg0: i32, %arg1: i32) -> (i32, i32, i32) {
    %c0_i32 = arith.constant 0 : i32
    %c0_i32_0 = arith.constant 0 : i32
    %c0_i32_1 = arith.constant 0 : i32
    return %arg0, %c0_i32, %c0_i32_0 : i32, i32, i32
  }
}

</mosaic_0001>

<llo_original>
// kernel: tpu_custom_call.1
$region0: #{tpu_custom_call.1}
  #allocation0 [shape = 'u32[]', space=smem, size = 0x4, offset = 0x4, fixed_abs, tag = 'smem constant byte address 0x4 - core index']
  #allocation1 [shape = 'u32[144,128]{1,0:T(1,128)}', space=vmem, size = 0x12000, scoped, tag = 'internal scratch']
  #allocation2 [shape = 'f32[16,512]{1,0:T(8,128)}', space=vmem, size = 0x8000, scoped, tag = 'scratch operand']
  %s0 = inlined_call_operand.hbm [shape: f32[20,2048], index: 0, kind: input, shape index: {}]
  %s1 = inlined_call_operand.hbm [shape: f32[20,2048], index: 1, kind: input, shape index: {}]
  %s2 = inlined_call_operand.hbm [shape: f32[20,1024], index: 2, kind: input, shape index: {}]
  %s3 = inlined_call_operand.hbm [shape: f32[1,1024], index: 3, kind: input, shape index: {}]
  %s4 = inlined_call_operand.hbm [shape: f32[1,1024], index: 4, kind: input, shape index: {}]
  %s5 = inlined_call_operand.hbm [shape: f32[2,1,128], index: 5, kind: output, shape index: {}]
  %s6 = sld [smem:[#allocation0]]
  $region81: #{tpu_custom_call.1} parent=0
    _
  %s8 = ssub.s32 1, %s6
  %s9 = scalar_select 0, %s8, %s6
  $region1: #{tpu_custom_call.1} parent=0
    #allocation3 [shape = 'u8[65536]{0}', space=vmem, size = 0x10000, scoped, tag = 'input window, operand 0']
    #allocation4 [shape = 's32[2]{0}', space=sflag, size = 0x8, scoped, tag = 'scoped memory for tpu_custom_call.1']
    #allocation5 [shape = 's32[2]{0}', space=sflag, size = 0x8, scoped, tag = 'scoped memory for tpu_custom_call.1']
    #allocation6 [shape = 'u8[65536]{0}', space=vmem, size = 0x10000, scoped, tag = 'input window, operand 1']
    #allocation7 [shape = 's32[2]{0}', space=sflag, size = 0x8, scoped, tag = 'scoped memory for tpu_custom_call.1']
    #allocation8 [shape = 'u8[65536]{0}', space=vmem, size = 0x10000, scoped, tag = 'input window, operand 2']
    #allocation9 [shape = 'u8[4096]{0}', space=vmem, size = 0x1000, scoped, tag = 'input window, operand 3']
    #allocation10 [shape = 's32[2]{0}', space=sflag, size = 0x8, scoped, tag = 'scoped memory for tpu_custom_call.1']
    #allocation11 [shape = 'u8[4096]{0}', space=vmem, size = 0x1000, scoped, tag = 'input window, operand 4']
    #allocation12 [shape = 'u8[1024]{0}', space=vmem, size = 0x400, scoped, tag = 'output window, operand 0']
    %10 = vsyncpa [#allocation4], 0
    %s11 = scalar_lea.sflag [#allocation4], 1
    %12 = vsyncpa %s11, 0
    %13 = vsyncpa [#allocation7], 0
    %s14 = scalar_lea.sflag [#allocation7], 1
    %15 = vsyncpa %s14, 0
    %16 = vsyncpa [#allocation10], 0
    %s17 = scalar_lea.sflag [#allocation10], 1
    %18 = vsyncpa %s17, 0
    %19 = vsyncpa [#allocation5], 0
    %s20 = scalar_lea.sflag [#allocation5], 1
    %21 = vsyncpa %s20, 0
    loop: start=0, step=1, limit=6
    $region2: #{tpu_custom_call.1} parent=1 // loop_pre_header
      _
    $region3: #{tpu_custom_call.1} parent=1 // loop_header
      %s23 = sphi 0, %s27
      %p24 = scmp.ge.s32.totalorder %s23, 6
      %s30 = sphi 0, %s42
      %s31 = sphi 0, %s38
      %s32 = sphi 0, %s30
      %s33 = sphi 0, %s31
      %s34 = sphi 0, %s32
      %s35 = sphi 0, %s33
      %s47 = sphi 0, %s49
      %s50 = sphi 0, %s47
      %s51 = sphi 0, %s50
      %s67 = sphi 0, %s51
      %s77 = sphi 0, %s79
      %s80 = sphi 0, %s77
      %s81 = sphi 0, %s80
      %s97 = sphi 0, %s81
      %s105 = sphi 0, %s107
      %s108 = sphi 0, %s105
      %s109 = sphi 0, %s108
      %s125 = sphi 0, %s109
      %s131 = sphi 0, %s133
      %s134 = sphi 0, %s131
      %s135 = sphi 0, %s134
      %s151 = sphi 0, %s135
      %s157 = sphi 0, %s159
      %s160 = sphi 0, %s157
      %s161 = sphi 0, %s160
      %s177 = sphi 0, %s161
      %s183 = sphi 0, %s185
      %s186 = sphi 0, %s183
      %s187 = sphi 0, %s186
      %s203 = sphi 0, %s187
    $region4: #{tpu_custom_call.1} parent=1 // loop_header_branch
      %26 = sbr.rel (%p24) target = $region8
    $region5: #{tpu_custom_call.1} parent=1 // loop_body
      %s28 = ssub.s32 %s23, 1
      %s29 = ssub.s32 %s23, 2
      %s36 = sadd.s32 1, %s31
      %p37 = scmp.ge.s32.totalorder %s36, 2
      %s38 = scalar_select %p37, 0, %s36
      %s39 = sadd.s32 1, %s30
      %s40 = scalar_select %p37, %s39, %s30
      %p41 = scmp.ge.s32.totalorder %s40, 2
      %s42 = scalar_select %p41, 0, %s40
      %s43 = ssub.s32 %s30, %s42
      %s44 = ssub.s32 %s31, %s38
      %s45 = sor.u32 %s43, %s44
      %p46 = scmp.eq.s32.totalorder %s45, 0
      %s48 = sadd.s32 %s47, 1
      %s49 = scalar_select %p46, %s47, %s48
      %p52 = pneg %p46
      %p53 = scmp.eq.s32.totalorder %s23, 3
      %p54 = por %p52, %p53
      %p55 = scmp.ne.s32.totalorder %s47, %s50
      %p56 = scmp.eq.s32.totalorder %s23, 0
      %p57 = por %p55, %p56
      %p58 = scmp.ne.s32.totalorder %s47, %s50
      %p59 = scmp.eq.s32.totalorder %s28, 3
      %p60 = por %p58, %p59
      %p61 = scmp.ne.s32.totalorder %s50, %s51
      %p62 = scmp.eq.s32.totalorder %s28, 0
      %p63 = por %p61, %p62
      %p64 = scmp.ne.s32.totalorder %s50, %s51
      %p65 = scmp.eq.s32.totalorder %s29, 3
      %p66 = por %p64, %p65
      %p68 = scmp.ne.s32.totalorder %s51, %s67
      %p69 = scmp.eq.s32.totalorder %s29, 0
      %p70 = por %p68, %p69
      %s71 = sadd.s32 %s31, 2
      %s72 = sadd.s32 %s38, 2
      %s73 = ssub.s32 %s30, %s42
      %s74 = ssub.s32 %s71, %s72
      %s75 = sor.u32 %s73, %s74
      %p76 = scmp.eq.s32.totalorder %s75, 0
      %s78 = sadd.s32 %s77, 1
      %s79 = scalar_select %p76, %s77, %s78
      %p82 = pneg %p76
      %p83 = scmp.eq.s32.totalorder %s23, 3
      %p84 = por %p82, %p83
      %p85 = scmp.ne.s32.totalorder %s77, %s80
      %p86 = scmp.eq.s32.totalorder %s23, 0
      %p87 = por %p85, %p86
      %p88 = scmp.ne.s32.totalorder %s77, %s80
      %p89 = scmp.eq.s32.totalorder %s28, 3
      %p90 = por %p88, %p89
      %p91 = scmp.ne.s32.totalorder %s80, %s81
      %p92 = scmp.eq.s32.totalorder %s28, 0
      %p93 = por %p91, %p92
      %p94 = scmp.ne.s32.totalorder %s80, %s81
      %p95 = scmp.eq.s32.totalorder %s29, 3
      %p96 = por %p94, %p95
      %p98 = scmp.ne.s32.totalorder %s81, %s97
      %p99 = scmp.eq.s32.totalorder %s29, 0
      %p100 = por %p98, %p99
      %s101 = ssub.s32 %s30, %s42
      %s102 = ssub.s32 %s31, %s38
      %s103 = sor.u32 %s101, %s102
      %p104 = scmp.eq.s32.totalorder %s103, 0
      %s106 = sadd.s32 %s105, 1
      %s107 = scalar_select %p104, %s105, %s106
      %p110 = pneg %p104
      %p111 = scmp.eq.s32.totalorder %s23, 3
      %p112 = por %p110, %p111
      %p113 = scmp.ne.s32.totalorder %s105, %s108
      %p114 = scmp.eq.s32.totalorder %s23, 0
      %p115 = por %p113, %p114
      %p116 = scmp.ne.s32.totalorder %s105, %s108
      %p117 = scmp.eq.s32.totalorder %s28, 3
      %p118 = por %p116, %p117
      %p119 = scmp.ne.s32.totalorder %s108, %s109
      %p120 = scmp.eq.s32.totalorder %s28, 0
      %p121 = por %p119, %p120
      %p122 = scmp.ne.s32.totalorder %s108, %s109
      %p123 = scmp.eq.s32.totalorder %s29, 3
      %p124 = por %p122, %p123
      %p126 = scmp.ne.s32.totalorder %s109, %s125
      %p127 = scmp.eq.s32.totalorder %s29, 0
      %p128 = por %p126, %p127
      %s129 = ssub.s32 %s31, %s38
      %p130 = scmp.eq.s32.totalorder %s129, 0
      %s132 = sadd.s32 %s131, 1
      %s133 = scalar_select %p130, %s131, %s132
      %p136 = pneg %p130
      %p137 = scmp.eq.s32.totalorder %s23, 3
      %p138 = por %p136, %p137
      %p139 = scmp.ne.s32.totalorder %s131, %s134
      %p140 = scmp.eq.s32.totalorder %s23, 0
      %p141 = por %p139, %p140
      %p142 = scmp.ne.s32.totalorder %s131, %s134
      %p143 = scmp.eq.s32.totalorder %s28, 3
      %p144 = por %p142, %p143
      %p145 = scmp.ne.s32.totalorder %s134, %s135
      %p146 = scmp.eq.s32.totalorder %s28, 0
      %p147 = por %p145, %p146
      %p148 = scmp.ne.s32.totalorder %s134, %s135
      %p149 = scmp.eq.s32.totalorder %s29, 3
      %p150 = por %p148, %p149
      %p152 = scmp.ne.s32.totalorder %s135, %s151
      %p153 = scmp.eq.s32.totalorder %s29, 0
      %p154 = por %p152, %p153
      %s155 = ssub.s32 %s31, %s38
      %p156 = scmp.eq.s32.totalorder %s155, 0
      %s158 = sadd.s32 %s157, 1
      %s159 = scalar_select %p156, %s157, %s158
      %p162 = pneg %p156
      %p163 = scmp.eq.s32.totalorder %s23, 3
      %p164 = por %p162, %p163
      %p165 = scmp.ne.s32.totalorder %s157, %s160
      %p166 = scmp.eq.s32.totalorder %s23, 0
      %p167 = por %p165, %p166
      %p168 = scmp.ne.s32.totalorder %s157, %s160
      %p169 = scmp.eq.s32.totalorder %s28, 3
      %p170 = por %p168, %p169
      %p171 = scmp.ne.s32.totalorder %s160, %s161
      %p172 = scmp.eq.s32.totalorder %s28, 0
      %p173 = por %p171, %p172
      %p174 = scmp.ne.s32.totalorder %s160, %s161
      %p175 = scmp.eq.s32.totalorder %s29, 3
      %p176 = por %p174, %p175
      %p178 = scmp.ne.s32.totalorder %s161, %s177
      %p179 = scmp.eq.s32.totalorder %s29, 0
      %p180 = por %p178, %p179
      %s181 = ssub.s32 %s30, %s42
      %p182 = scmp.eq.s32.totalorder %s181, 0
      %s184 = sadd.s32 %s183, 1
      %s185 = scalar_select %p182, %s183, %s184
      %p188 = pneg %p182
      %p189 = scmp.eq.s32.totalorder %s23, 3
      %p190 = por %p188, %p189
      %p191 = scmp.ne.s32.totalorder %s183, %s186
      %p192 = scmp.eq.s32.totalorder %s23, 0
      %p193 = por %p191, %p192
      %p194 = scmp.ne.s32.totalorder %s183, %s186
      %p195 = scmp.eq.s32.totalorder %s28, 3
      %p196 = por %p194, %p195
      %p197 = scmp.ne.s32.totalorder %s186, %s187
      %p198 = scmp.eq.s32.totalorder %s28, 0
      %p199 = por %p197, %p198
      %p200 = scmp.ne.s32.totalorder %s186, %s187
      %p201 = scmp.eq.s32.totalorder %s29, 3
      %p202 = por %p200, %p201
      %p204 = scmp.ne.s32.totalorder %s187, %s203
      %p205 = scmp.eq.s32.totalorder %s29, 0
      %p206 = por %p204, %p205
      %p207 = scmp.le.s32.totalorder 1, %s23
      %p208 = scmp.lt.s32.totalorder %s23, 5
      %p209 = pnand %p207, %p208
      %p210 = pneg %p209
      // Predicated region
      $region9: #{tpu_custom_call.1} parent=5 // pred_check
        _
      $region10: #{tpu_custom_call.1} parent=5 // pred_check_branch
        %212 = sbr.rel (%p209) target = $region12
      $region11: #{tpu_custom_call.1} parent=5 // pred_region
        %s213 = ssub.s32 %s23, 1
      $region12: #{tpu_custom_call.1} parent=5 // pred_fallthru
        _
      %p214 = scmp.lt.s32.totalorder %s23, 4
      // Predicated region
      $region13: #{tpu_custom_call.1} parent=5 // pred_check
        %p215 = pneg %p214
      $region14: #{tpu_custom_call.1} parent=5 // pred_check_branch
        %217 = sbr.rel (%p215) target = $region16
      $region15: #{tpu_custom_call.1} parent=5 // pred_region
        // Predicated region
        $region17: #{tpu_custom_call.1} parent=15 // pred_check
          %p218 = pneg %p57
        $region18: #{tpu_custom_call.1} parent=15 // pred_check_branch
          %220 = sbr.rel (%p218) target = $region20
        $region19: #{tpu_custom_call.1} parent=15 // pred_region
          %s221 = sand.u32 %s47, 1
          %s222 = scalar_lea.sflag [#allocation4], %s221
          %s223 = sand.u32 %s47, 1
          %s224 = smul.addr %s223, 64
          %s225 = scalar_lea.vmem [#allocation3], %s224
          %s226 = smul.u32 2, %s30
          %s227 = smul.u32 4, %s31
          %s228 = ssub.s32 3, %s226
          %p229 = scmp.lt.s32.totalorder %s228, 2
          %s230 = scalar_select %p229, %s228, 2
          %s231 = smul.u32 128, %s230
          %s232 = smul.u32 %s231, 4
          %s234 = ssub.s32 1024, %s232
          %235 = vsyncadd %s222, %s234
          %p236 = scmp.ne.s32.totalorder 0, %s232
          %s237 = smul.addr %s226, 16
          %s238 = sadd.s32 %s227, %s237
          %s239 = smul.addr %s238, 128
          %s240 = scalar_lea.hbm %s0, %s239
          %s241 = smul.u32 32, %s230
          %s242 = sshll.u32 %s225, 4
          %s243 = int_to_ptr.vmem [resolvable:$true] %s242
          %s244 = sshll.u32 %s241, 4
          %248 = dma.hbm_to_vmem [thread:$0]  (%p236), %s240, %s244, %s243, %s222, 2048, 512, 32
        $region20: #{tpu_custom_call.1} parent=15 // pred_fallthru
          _
        // Predicated region
        $region21: #{tpu_custom_call.1} parent=15 // pred_check
          %p249 = pneg %p87
        $region22: #{tpu_custom_call.1} parent=15 // pred_check_branch
          %251 = sbr.rel (%p249) target = $region24
        $region23: #{tpu_custom_call.1} parent=15 // pred_region
          %s252 = sand.u32 %s23, 1
          %s253 = scalar_lea.sflag [#allocation7], %s252
          %s254 = sand.u32 %s77, 1
          %s255 = smul.addr %s254, 64
          %s256 = scalar_lea.vmem [#allocation6], %s255
          %s257 = sadd.s32 %s31, 2
          %s258 = smul.u32 2, %s30
          %s259 = smul.u32 4, %s257
          %s260 = ssub.s32 3, %s258
          %p261 = scmp.lt.s32.totalorder %s260, 2
          %s262 = scalar_select %p261, %s260, 2
          %s263 = smul.u32 128, %s262
          %s264 = smul.u32 %s263, 4
          %s266 = ssub.s32 1024, %s264
          %267 = vsyncadd %s253, %s266
          %p268 = scmp.ne.s32.totalorder 0, %s264
          %s269 = smul.addr %s258, 16
          %s270 = sadd.s32 %s259, %s269
          %s271 = smul.addr %s270, 128
          %s272 = scalar_lea.hbm %s1, %s271
          %s273 = smul.u32 32, %s262
          %s274 = sshll.u32 %s256, 4
          %s275 = int_to_ptr.vmem [resolvable:$true] %s274
          %s276 = sshll.u32 %s273, 4
          %280 = dma.hbm_to_vmem [thread:$0]  (%p268), %s272, %s276, %s275, %s253, 2048, 512, 32
        $region24: #{tpu_custom_call.1} parent=15 // pred_fallthru
          _
        // Predicated region
        $region25: #{tpu_custom_call.1} parent=15 // pred_check
          %p281 = pneg %p115
        $region26: #{tpu_custom_call.1} parent=15 // pred_check_branch
          %283 = sbr.rel (%p281) target = $region28
        $region27: #{tpu_custom_call.1} parent=15 // pred_region
          %s284 = sand.u32 %s23, 1
          %s285 = scalar_lea.sflag [#allocation7], %s284
          %s286 = sand.u32 %s105, 1
          %s287 = smul.addr %s286, 64
          %s288 = scalar_lea.vmem [#allocation8], %s287
          %s289 = smul.u32 2, %s30
          %s290 = smul.u32 4, %s31
          %s291 = ssub.s32 3, %s289
          %p292 = scmp.lt.s32.totalorder %s291, 2
          %s293 = scalar_select %p292, %s291, 2
          %s294 = smul.u32 128, %s293
          %s295 = smul.u32 %s294, 4
          %s297 = ssub.s32 1024, %s295
          %298 = vsyncadd %s285, %s297
          %p299 = scmp.ne.s32.totalorder 0, %s295
          %s300 = smul.addr %s289, 8
          %s301 = sadd.s32 %s290, %s300
          %s302 = smul.addr %s301, 128
          %s303 = scalar_lea.hbm %s2, %s302
          %s304 = smul.u32 32, %s293
          %s305 = sshll.u32 %s288, 4
          %s306 = int_to_ptr.vmem [resolvable:$true] %s305
          %s307 = sshll.u32 %s304, 4
          %311 = dma.hbm_to_vmem [thread:$0]  (%p299), %s303, %s307, %s306, %s285, 1024, 512, 32
        $region28: #{tpu_custom_call.1} parent=15 // pred_fallthru
          _
        // Predicated region
        $region29: #{tpu_custom_call.1} parent=15 // pred_check
          %p312 = pneg %p141
        $region30: #{tpu_custom_call.1} parent=15 // pred_check_branch
          %314 = sbr.rel (%p312) target = $region32
        $region31: #{tpu_custom_call.1} parent=15 // pred_region
          %s315 = sand.u32 %s23, 1
          %s316 = scalar_lea.sflag [#allocation10], %s315
          %s317 = sand.u32 %s131, 1
          %s318 = smul.addr %s317, 4
          %s319 = scalar_lea.vmem [#allocation9], %s318
          %s320 = smul.u32 4, %s31
          %s322 = ssub.s32 64, 64
          %323 = vsyncadd %s316, %s322
          %s324 = smul.addr %s320, 16
          %s325 = scalar_lea.hbm %s3, %s324
          %s327 = sshll.u32 %s319, 4
          %s328 = int_to_ptr.vmem [resolvable:$true] %s327
          %330 = dma.hbm_to_vmem [thread:$0]  %s325, 64, %s328, %s316
        $region32: #{tpu_custom_call.1} parent=15 // pred_fallthru
          _
        // Predicated region
        $region33: #{tpu_custom_call.1} parent=15 // pred_check
          %p331 = pneg %p167
        $region34: #{tpu_custom_call.1} parent=15 // pred_check_branch
          %333 = sbr.rel (%p331) target = $region36
        $region35: #{tpu_custom_call.1} parent=15 // pred_region
          %s334 = sand.u32 %s23, 1
          %s335 = scalar_lea.sflag [#allocation10], %s334
          %s336 = sand.u32 %s157, 1
          %s337 = smul.addr %s336, 4
          %s338 = scalar_lea.vmem [#allocation11], %s337
          %s339 = smul.u32 4, %s31
          %s341 = ssub.s32 64, 64
          %342 = vsyncadd %s335, %s341
          %s343 = smul.addr %s339, 16
          %s344 = scalar_lea.hbm %s4, %s343
          %s346 = sshll.u32 %s338, 4
          %s347 = int_to_ptr.vmem [resolvable:$true] %s346
          %349 = dma.hbm_to_vmem [thread:$0]  %s344, 64, %s347, %s335
        $region36: #{tpu_custom_call.1} parent=15 // pred_fallthru
          _
      $region16: #{tpu_custom_call.1} parent=5 // pred_fallthru
        _
      %p350 = scmp.le.s32.totalorder 1, %s23
      %p351 = scmp.lt.s32.totalorder %s23, 5
      %p352 = pnand %p350, %p351
      %p353 = pneg %p352
      // Predicated region
      $region37: #{tpu_custom_call.1} parent=5 // pred_check
        _
      $region38: #{tpu_custom_call.1} parent=5 // pred_check_branch
        %355 = sbr.rel (%p352) target = $region40
      $region39: #{tpu_custom_call.1} parent=5 // pred_region
        %s356 = ssub.s32 %s23, 1
        %s357 = sand.u32 %s50, 1
        %s358 = scalar_lea.sflag [#allocation4], %s357
        %s359 = sand.u32 %s50, 1
        %s360 = smul.addr %s359, 64
        %s361 = scalar_lea.vmem [#allocation3], %s360
        // Predicated region
        $region41: #{tpu_custom_call.1} parent=39 // pred_check
          %p362 = pneg %p63
        $region42: #{tpu_custom_call.1} parent=39 // pred_check_branch
          %364 = sbr.rel (%p362) target = $region44
        $region43: #{tpu_custom_call.1} parent=39 // pred_region
          %365 = dma.done %s358, 1024
        $region44: #{tpu_custom_call.1} parent=39 // pred_fallthru
          _
        %s366 = sand.u32 %s28, 1
        %s367 = scalar_lea.sflag [#allocation7], %s366
        %s368 = sand.u32 %s80, 1
        %s369 = smul.addr %s368, 64
        %s370 = scalar_lea.vmem [#allocation6], %s369
        // Predicated region
        $region45: #{tpu_custom_call.1} parent=39 // pred_check
          %p371 = pneg %p93
        $region46: #{tpu_custom_call.1} parent=39 // pred_check_branch
          %373 = sbr.rel (%p371) target = $region48
        $region47: #{tpu_custom_call.1} parent=39 // pred_region
          %374 = dma.done %s367, 1024
        $region48: #{tpu_custom_call.1} parent=39 // pred_fallthru
          _
        %s375 = sand.u32 %s28, 1
        %s376 = scalar_lea.sflag [#allocation7], %s375
        %s377 = sand.u32 %s108, 1
        %s378 = smul.addr %s377, 64
        %s379 = scalar_lea.vmem [#allocation8], %s378
        // Predicated region
        $region49: #{tpu_custom_call.1} parent=39 // pred_check
          %p380 = pneg %p121
        $region50: #{tpu_custom_call.1} parent=39 // pred_check_branch
          %382 = sbr.rel (%p380) target = $region52
        $region51: #{tpu_custom_call.1} parent=39 // pred_region
          %383 = dma.done %s376, 1024
        $region52: #{tpu_custom_call.1} parent=39 // pred_fallthru
          _
        %s384 = sand.u32 %s28, 1
        %s385 = scalar_lea.sflag [#allocation10], %s384
        %s386 = sand.u32 %s134, 1
        %s387 = smul.addr %s386, 4
        %s388 = scalar_lea.vmem [#allocation9], %s387
        // Predicated region
        $region53: #{tpu_custom_call.1} parent=39 // pred_check
          %p389 = pneg %p147
        $region54: #{tpu_custom_call.1} parent=39 // pred_check_branch
          %391 = sbr.rel (%p389) target = $region56
        $region55: #{tpu_custom_call.1} parent=39 // pred_region
          %392 = dma.done %s385, 64
        $region56: #{tpu_custom_call.1} parent=39 // pred_fallthru
          _
        %s393 = sand.u32 %s28, 1
        %s394 = scalar_lea.sflag [#allocation10], %s393
        %s395 = sand.u32 %s160, 1
        %s396 = smul.addr %s395, 4
        %s397 = scalar_lea.vmem [#allocation11], %s396
        // Predicated region
        $region57: #{tpu_custom_call.1} parent=39 // pred_check
          %p398 = pneg %p173
        $region58: #{tpu_custom_call.1} parent=39 // pred_check_branch
          %400 = sbr.rel (%p398) target = $region60
        $region59: #{tpu_custom_call.1} parent=39 // pred_region
          %401 = dma.done %s394, 64
        $region60: #{tpu_custom_call.1} parent=39 // pred_fallthru
          _
        %s402 = sand.u32 %s50, 1
        %s403 = scalar_lea.sflag [#allocation4], %s402
        %s404 = sand.u32 %s50, 1
        %s405 = smul.addr %s404, 64
        %s406 = scalar_lea.vmem [#allocation3], %s405
        %p407 = pneg %p63
        %p408 = pneg %p60
        %s409 = sand.u32 %s28, 1
        %s410 = scalar_lea.sflag [#allocation7], %s409
        %s411 = sand.u32 %s80, 1
        %s412 = smul.addr %s411, 64
        %s413 = scalar_lea.vmem [#allocation6], %s412
        %p414 = pneg %p93
        %p415 = pneg %p90
        %s416 = sand.u32 %s28, 1
        %s417 = scalar_lea.sflag [#allocation7], %s416
        %s418 = sand.u32 %s108, 1
        %s419 = smul.addr %s418, 64
        %s420 = scalar_lea.vmem [#allocation8], %s419
        %p421 = pneg %p121
        %p422 = pneg %p118
        %s423 = sand.u32 %s28, 1
        %s424 = scalar_lea.sflag [#allocation10], %s423
        %s425 = sand.u32 %s134, 1
        %s426 = smul.addr %s425, 4
        %s427 = scalar_lea.vmem [#allocation9], %s426
        %p428 = pneg %p147
        %p429 = pneg %p144
        %s430 = sand.u32 %s28, 1
        %s431 = scalar_lea.sflag [#allocation10], %s430
        %s432 = sand.u32 %s160, 1
        %s433 = smul.addr %s432, 4
        %s434 = scalar_lea.vmem [#allocation11], %s433
        %p435 = pneg %p173
        %p436 = pneg %p170
        %p437 = pneg %p199
        %p438 = pneg %p196
        %s439 = sand.u32 %s186, 1
        %s440 = scalar_lea.sflag [#allocation5], %s439
        %s441 = sand.u32 %s186, 1
        %s442 = scalar_lea.vmem [#allocation12], %s441
        %s443 = smul.u32 2, %s32
        %s444 = smul.u32 4, %s33
        %s445 = ssub.s32 3, %s443
        %p446 = scmp.lt.s32.totalorder %s445, 2
        %s447 = scalar_select %p446, %s445, 2
        %s448 = smul.u32 128, %s447
        %s449 = smul.u32 %s448, 4
        %s450 = sadd.s32 %s33, 2
        %s451 = smul.u32 2, %s32
        %s452 = smul.u32 4, %s450
        %s453 = ssub.s32 3, %s451
        %p454 = scmp.lt.s32.totalorder %s453, 2
        %s455 = scalar_select %p454, %s453, 2
        %s456 = smul.u32 128, %s455
        %s457 = smul.u32 %s456, 4
        %s458 = smul.u32 2, %s32
        %s459 = smul.u32 4, %s33
        %s460 = ssub.s32 3, %s458
        %p461 = scmp.lt.s32.totalorder %s460, 2
        %s462 = scalar_select %p461, %s460, 2
        %s463 = smul.u32 128, %s462
        %s464 = smul.u32 %s463, 4
        %s465 = smul.u32 4, %s33
        %s466 = smul.u32 4, %s33
        %p467 = scmp.eq.s32.totalorder %s33, 0
        // Predicated region
        $region61: #{tpu_custom_call.1} parent=39 // pred_check
          %p468 = pneg %p467
        $region62: #{tpu_custom_call.1} parent=39 // pred_check_branch
          %470 = sbr.rel (%p468) target = $region64
        $region63: #{tpu_custom_call.1} parent=39 // pred_region
          %471 = vst [vmem:[#allocation2] sm:$0xff] 0.0
          %472 = vst [vmem:[#allocation2 + $0x8] sm:$0xff] 0.0
          %473 = vst [vmem:[#allocation2 + $0x10] sm:$0xff] 0.0
          %474 = vst [vmem:[#allocation2 + $0x18] sm:$0xff] 0.0
          %475 = vst [vmem:[#allocation2 + $0x20] sm:$0xff] 0.0
          %476 = vst [vmem:[#allocation2 + $0x28] sm:$0xff] 0.0
          %477 = vst [vmem:[#allocation2 + $0x30] sm:$0xff] 0.0
          %478 = vst [vmem:[#allocation2 + $0x38] sm:$0xff] 0.0
        $region64: #{tpu_custom_call.1} parent=39 // pred_fallthru
          _
        %v479 = vld [vmem:[%s361] sm:$0xff]
        %v480 = vld [vmem:[%s361 + $0x8] sm:$0xff]
        %v481 = vld [vmem:[%s361 + $0x10] sm:$0xff]
        %v482 = vld [vmem:[%s361 + $0x18] sm:$0xff]
        %v483 = vld [vmem:[%s361 + $0x20] sm:$0xff]
        %v484 = vld [vmem:[%s361 + $0x28] sm:$0xff]
        %v485 = vld [vmem:[%s361 + $0x30] sm:$0xff]
        %v486 = vld [vmem:[%s361 + $0x38] sm:$0xff]
        %v487 = vld [vmem:[%s379] sm:$0xff]
        %v488 = vld [vmem:[%s379 + $0x8] sm:$0xff]
        %v489 = vld [vmem:[%s379 + $0x10] sm:$0xff]
        %v490 = vld [vmem:[%s379 + $0x18] sm:$0xff]
        %v491 = vld [vmem:[%s379 + $0x20] sm:$0xff]
        %v492 = vld [vmem:[%s379 + $0x28] sm:$0xff]
        %v493 = vld [vmem:[%s379 + $0x30] sm:$0xff]
        %v494 = vld [vmem:[%s379 + $0x38] sm:$0xff]
        %v495 = vsub.f32 %v479, %v487
        %v496 = vsub.f32 %v480, %v488
        %v497 = vsub.f32 %v481, %v489
        %v498 = vsub.f32 %v482, %v490
        %v499 = vsub.f32 %v483, %v491
        %v500 = vsub.f32 %v484, %v492
        %v501 = vsub.f32 %v485, %v493
        %v502 = vsub.f32 %v486, %v494
        %v503 = vld [vmem:[%s370] sm:$0xff]
        %v504 = vld [vmem:[%s370 + $0x8] sm:$0xff]
        %v505 = vld [vmem:[%s370 + $0x10] sm:$0xff]
        %v506 = vld [vmem:[%s370 + $0x18] sm:$0xff]
        %v507 = vld [vmem:[%s370 + $0x20] sm:$0xff]
        %v508 = vld [vmem:[%s370 + $0x28] sm:$0xff]
        %v509 = vld [vmem:[%s370 + $0x30] sm:$0xff]
        %v510 = vld [vmem:[%s370 + $0x38] sm:$0xff]
        %v511 = vld [vmem:[%s388] sm:$0xf]
        %v512 = vld [vmem:[%s397] sm:$0xf]
        %v514 = vlaneseq
        %v515 = vshrl.u32 %v514, 7
        %v516 = vsub.s32 0, %v515
        %v517 = vrot.slane %v511, %v516
        %v518 = vlaneseq
        %v519 = vshrl.u32 %v518, 7
        %v520 = vsub.s32 1, %v519
        %v521 = vrot.slane %v511, %v520
        %v522 = vlaneseq
        %v523 = vshrl.u32 %v522, 7
        %v524 = vsub.s32 2, %v523
        %v525 = vrot.slane %v511, %v524
        %v526 = vlaneseq
        %v527 = vshrl.u32 %v526, 7
        %v528 = vsub.s32 3, %v527
        %v529 = vrot.slane %v511, %v528
        %v534 = vsub.f32 %v517, %v503
        %v535 = vsub.f32 %v521, %v504
        %v536 = vsub.f32 %v525, %v505
        %v537 = vsub.f32 %v529, %v506
        %v538 = vsub.f32 %v517, %v507
        %v539 = vsub.f32 %v521, %v508
        %v540 = vsub.f32 %v525, %v509
        %v541 = vsub.f32 %v529, %v510
        %v542 = vmax.f32 %v534, 0.0
        %v543 = vmax.f32 %v535, 0.0
        %v544 = vmax.f32 %v536, 0.0
        %v545 = vmax.f32 %v537, 0.0
        %v546 = vmax.f32 %v538, 0.0
        %v547 = vmax.f32 %v539, 0.0
        %v548 = vmax.f32 %v540, 0.0
        %v549 = vmax.f32 %v541, 0.0
        %v550 = vand.u32 2147483647, %v534
        %v551 = vand.u32 2147483647, %v535
        %v552 = vand.u32 2147483647, %v536
        %v553 = vand.u32 2147483647, %v537
        %v554 = vand.u32 2147483647, %v538
        %v555 = vand.u32 2147483647, %v539
        %v556 = vand.u32 2147483647, %v540
        %v557 = vand.u32 2147483647, %v541
        %v558 = vsub.f32 0.0, %v550
        %v559 = vsub.f32 0.0, %v551
        %v560 = vsub.f32 0.0, %v552
        %v561 = vsub.f32 0.0, %v553
        %v562 = vsub.f32 0.0, %v554
        %v563 = vsub.f32 0.0, %v555
        %v564 = vsub.f32 0.0, %v556
        %v565 = vsub.f32 0.0, %v557
        %v566 = vmul.f32 %v558, 1.442695
        %v567 = vpow.pop %v566
        %v568 = vmul.f32 %v559, 1.442695
        %v569 = vpow.pop %v568
        %v570 = vmul.f32 %v560, 1.442695
        %v571 = vpow.pop %v570
        %v572 = vmul.f32 %v561, 1.442695
        %v573 = vpow.pop %v572
        %v574 = vmul.f32 %v562, 1.442695
        %v575 = vpow.pop %v574
        %v576 = vmul.f32 %v563, 1.442695
        %v577 = vpow.pop %v576
        %v578 = vmul.f32 %v564, 1.442695
        %v579 = vpow.pop %v578
        %v580 = vmul.f32 %v565, 1.442695
        %v581 = vpow.pop %v580
        %v582 = vadd.f32 %v567, 1.0
        %v583 = vlog2.pop %v582
        %v584 = vmul.f32 %v583, 0.6931472
        %v585 = vmul.f32 -0.5, %v567
        %v586 = vadd.f32 %v585, 1.0
        %v587 = vmul.f32 %v586, %v567
        %v588 = vand.u32 2147483647, %v567
        %vm589 = vcmp.lt.f32.partialorder %v588, 0.0004427343
        %v590 = vsel %vm589, %v587, %v584
        %v591 = vadd.f32 %v569, 1.0
        %v592 = vlog2.pop %v591
        %v593 = vmul.f32 %v592, 0.6931472
        %v594 = vmul.f32 -0.5, %v569
        %v595 = vadd.f32 %v594, 1.0
        %v596 = vmul.f32 %v595, %v569
        %v597 = vand.u32 2147483647, %v569
        %vm598 = vcmp.lt.f32.partialorder %v597, 0.0004427343
        %v599 = vsel %vm598, %v596, %v593
        %v600 = vadd.f32 %v571, 1.0
        %v601 = vlog2.pop %v600
        %v602 = vmul.f32 %v601, 0.6931472
        %v603 = vmul.f32 -0.5, %v571
        %v604 = vadd.f32 %v603, 1.0
        %v605 = vmul.f32 %v604, %v571
        %v606 = vand.u32 2147483647, %v571
        %vm607 = vcmp.lt.f32.partialorder %v606, 0.0004427343
        %v608 = vsel %vm607, %v605, %v602
        %v609 = vadd.f32 %v573, 1.0
        %v610 = vlog2.pop %v609
        %v611 = vmul.f32 %v610, 0.6931472
        %v612 = vmul.f32 -0.5, %v573
        %v613 = vadd.f32 %v612, 1.0
        %v614 = vmul.f32 %v613, %v573
        %v615 = vand.u32 2147483647, %v573
        %vm616 = vcmp.lt.f32.partialorder %v615, 0.0004427343
        %v617 = vsel %vm616, %v614, %v611
        %v618 = vadd.f32 %v575, 1.0
        %v619 = vlog2.pop %v618
        %v620 = vmul.f32 %v619, 0.6931472
        %v621 = vmul.f32 -0.5, %v575
        %v622 = vadd.f32 %v621, 1.0
        %v623 = vmul.f32 %v622, %v575
        %v624 = vand.u32 2147483647, %v575
        %vm625 = vcmp.lt.f32.partialorder %v624, 0.0004427343
        %v626 = vsel %vm625, %v623, %v620
        %v627 = vadd.f32 %v577, 1.0
        %v628 = vlog2.pop %v627
        %v629 = vmul.f32 %v628, 0.6931472
        %v630 = vmul.f32 -0.5, %v577
        %v631 = vadd.f32 %v630, 1.0
        %v632 = vmul.f32 %v631, %v577
        %v633 = vand.u32 2147483647, %v577
        %vm634 = vcmp.lt.f32.partialorder %v633, 0.0004427343
        %v635 = vsel %vm634, %v632, %v629
        %v636 = vadd.f32 %v579, 1.0
        %v637 = vlog2.pop %v636
        %v638 = vmul.f32 %v637, 0.6931472
        %v639 = vmul.f32 -0.5, %v579
        %v640 = vadd.f32 %v639, 1.0
        %v641 = vmul.f32 %v640, %v579
        %v642 = vand.u32 2147483647, %v579
        %vm643 = vcmp.lt.f32.partialorder %v642, 0.0004427343
        %v644 = vsel %vm643, %v641, %v638
        %v645 = vadd.f32 %v581, 1.0
        %v646 = vlog2.pop %v645
        %v647 = vmul.f32 %v646, 0.6931472
        %v648 = vmul.f32 -0.5, %v581
        %v649 = vadd.f32 %v648, 1.0
        %v650 = vmul.f32 %v649, %v581
        %v651 = vand.u32 2147483647, %v581
        %vm652 = vcmp.lt.f32.partialorder %v651, 0.0004427343
        %v653 = vsel %vm652, %v650, %v647
        %v654 = vadd.f32 %v542, %v590
        %v655 = vadd.f32 %v543, %v599
        %v656 = vadd.f32 %v544, %v608
        %v657 = vadd.f32 %v545, %v617
        %v658 = vadd.f32 %v546, %v626
        %v659 = vadd.f32 %v547, %v635
        %v660 = vadd.f32 %v548, %v644
        %v661 = vadd.f32 %v549, %v653
        %v662 = vsub.f32 %v517, %v654
        %v663 = vsub.f32 %v521, %v655
        %v664 = vsub.f32 %v525, %v656
        %v665 = vsub.f32 %v529, %v657
        %v666 = vsub.f32 %v517, %v658
        %v667 = vsub.f32 %v521, %v659
        %v668 = vsub.f32 %v525, %v660
        %v669 = vsub.f32 %v529, %v661
        %v671 = vlaneseq
        %v672 = vshrl.u32 %v671, 7
        %v673 = vsub.s32 0, %v672
        %v674 = vrot.slane %v512, %v673
        %v675 = vlaneseq
        %v676 = vshrl.u32 %v675, 7
        %v677 = vsub.s32 1, %v676
        %v678 = vrot.slane %v512, %v677
        %v679 = vlaneseq
        %v680 = vshrl.u32 %v679, 7
        %v681 = vsub.s32 2, %v680
        %v682 = vrot.slane %v512, %v681
        %v683 = vlaneseq
        %v684 = vshrl.u32 %v683, 7
        %v685 = vsub.s32 3, %v684
        %v686 = vrot.slane %v512, %v685
        %v691 = vsub.f32 %v662, %v674
        %v692 = vsub.f32 %v663, %v678
        %v693 = vsub.f32 %v664, %v682
        %v694 = vsub.f32 %v665, %v686
        %v695 = vsub.f32 %v666, %v674
        %v696 = vsub.f32 %v667, %v678
        %v697 = vsub.f32 %v668, %v682
        %v698 = vsub.f32 %v669, %v686
        %v699 = vand.u32 2147483647, %v691
        %v700 = vand.u32 2147483647, %v692
        %v701 = vand.u32 2147483647, %v693
        %v702 = vand.u32 2147483647, %v694
        %v703 = vand.u32 2147483647, %v695
        %v704 = vand.u32 2147483647, %v696
        %v705 = vand.u32 2147483647, %v697
        %v706 = vand.u32 2147483647, %v698
        %v707 = vsub.f32 0.0, %v699
        %v708 = vsub.f32 0.0, %v700
        %v709 = vsub.f32 0.0, %v701
        %v710 = vsub.f32 0.0, %v702
        %v711 = vsub.f32 0.0, %v703
        %v712 = vsub.f32 0.0, %v704
        %v713 = vsub.f32 0.0, %v705
        %v714 = vsub.f32 0.0, %v706
        %v715 = vmul.f32 %v707, 1.442695
        %v716 = vpow.pop %v715
        %v717 = vmul.f32 %v708, 1.442695
        %v718 = vpow.pop %v717
        %v719 = vmul.f32 %v709, 1.442695
        %v720 = vpow.pop %v719
        %v721 = vmul.f32 %v710, 1.442695
        %v722 = vpow.pop %v721
        %v723 = vmul.f32 %v711, 1.442695
        %v724 = vpow.pop %v723
        %v725 = vmul.f32 %v712, 1.442695
        %v726 = vpow.pop %v725
        %v727 = vmul.f32 %v713, 1.442695
        %v728 = vpow.pop %v727
        %v729 = vmul.f32 %v714, 1.442695
        %v730 = vpow.pop %v729
        %v731 = vmax.f32 %v691, 0.0
        %v732 = vmax.f32 %v692, 0.0
        %v733 = vmax.f32 %v693, 0.0
        %v734 = vmax.f32 %v694, 0.0
        %v735 = vmax.f32 %v695, 0.0
        %v736 = vmax.f32 %v696, 0.0
        %v737 = vmax.f32 %v697, 0.0
        %v738 = vmax.f32 %v698, 0.0
        %v739 = vadd.f32 %v674, %v731
        %v740 = vadd.f32 %v678, %v732
        %v741 = vadd.f32 %v682, %v733
        %v742 = vadd.f32 %v686, %v734
        %v743 = vadd.f32 %v674, %v735
        %v744 = vadd.f32 %v678, %v736
        %v745 = vadd.f32 %v682, %v737
        %v746 = vadd.f32 %v686, %v738
        %v747 = vadd.f32 %v716, 1.0
        %v748 = vlog2.pop %v747
        %v749 = vmul.f32 %v748, 0.6931472
        %v750 = vmul.f32 -0.5, %v716
        %v751 = vadd.f32 %v750, 1.0
        %v752 = vmul.f32 %v751, %v716
        %v753 = vand.u32 2147483647, %v716
        %vm754 = vcmp.lt.f32.partialorder %v753, 0.0004427343
        %v755 = vsel %vm754, %v752, %v749
        %v756 = vadd.f32 %v718, 1.0
        %v757 = vlog2.pop %v756
        %v758 = vmul.f32 %v757, 0.6931472
        %v759 = vmul.f32 -0.5, %v718
        %v760 = vadd.f32 %v759, 1.0
        %v761 = vmul.f32 %v760, %v718
        %v762 = vand.u32 2147483647, %v718
        %vm763 = vcmp.lt.f32.partialorder %v762, 0.0004427343
        %v764 = vsel %vm763, %v761, %v758
        %v765 = vadd.f32 %v720, 1.0
        %v766 = vlog2.pop %v765
        %v767 = vmul.f32 %v766, 0.6931472
        %v768 = vmul.f32 -0.5, %v720
        %v769 = vadd.f32 %v768, 1.0
        %v770 = vmul.f32 %v769, %v720
        %v771 = vand.u32 2147483647, %v720
        %vm772 = vcmp.lt.f32.partialorder %v771, 0.0004427343
        %v773 = vsel %vm772, %v770, %v767
        %v774 = vadd.f32 %v722, 1.0
        %v775 = vlog2.pop %v774
        %v776 = vmul.f32 %v775, 0.6931472
        %v777 = vmul.f32 -0.5, %v722
        %v778 = vadd.f32 %v777, 1.0
        %v779 = vmul.f32 %v778, %v722
        %v780 = vand.u32 2147483647, %v722
        %vm781 = vcmp.lt.f32.partialorder %v780, 0.0004427343
        %v782 = vsel %vm781, %v779, %v776
        %v783 = vadd.f32 %v724, 1.0
        %v784 = vlog2.pop %v783
        %v785 = vmul.f32 %v784, 0.6931472
        %v786 = vmul.f32 -0.5, %v724
        %v787 = vadd.f32 %v786, 1.0
        %v788 = vmul.f32 %v787, %v724
        %v789 = vand.u32 2147483647, %v724
        %vm790 = vcmp.lt.f32.partialorder %v789, 0.0004427343
        %v791 = vsel %vm790, %v788, %v785
        %v792 = vadd.f32 %v726, 1.0
        %v793 = vlog2.pop %v792
        %v794 = vmul.f32 %v793, 0.6931472
        %v795 = vmul.f32 -0.5, %v726
        %v796 = vadd.f32 %v795, 1.0
        %v797 = vmul.f32 %v796, %v726
        %v798 = vand.u32 2147483647, %v726
        %vm799 = vcmp.lt.f32.partialorder %v798, 0.0004427343
        %v800 = vsel %vm799, %v797, %v794
        %v801 = vadd.f32 %v728, 1.0
        %v802 = vlog2.pop %v801
        %v803 = vmul.f32 %v802, 0.6931472
        %v804 = vmul.f32 -0.5, %v728
        %v805 = vadd.f32 %v804, 1.0
        %v806 = vmul.f32 %v805, %v728
        %v807 = vand.u32 2147483647, %v728
        %vm808 = vcmp.lt.f32.partialorder %v807, 0.0004427343
        %v809 = vsel %vm808, %v806, %v803
        %v810 = vadd.f32 %v730, 1.0
        %v811 = vlog2.pop %v810
        %v812 = vmul.f32 %v811, 0.6931472
        %v813 = vmul.f32 -0.5, %v730
        %v814 = vadd.f32 %v813, 1.0
        %v815 = vmul.f32 %v814, %v730
        %v816 = vand.u32 2147483647, %v730
        %vm817 = vcmp.lt.f32.partialorder %v816, 0.0004427343
        %v818 = vsel %vm817, %v815, %v812
        %v819 = vadd.f32 %v739, %v755
        %v820 = vadd.f32 %v740, %v764
        %v821 = vadd.f32 %v741, %v773
        %v822 = vadd.f32 %v742, %v782
        %v823 = vadd.f32 %v743, %v791
        %v824 = vadd.f32 %v744, %v800
        %v825 = vadd.f32 %v745, %v809
        %v826 = vadd.f32 %v746, %v818
        %v827 = vadd.f32 %v716, 1.0
        %v828 = vadd.f32 %v718, 1.0
        %v829 = vadd.f32 %v720, 1.0
        %v830 = vadd.f32 %v722, 1.0
        %v831 = vadd.f32 %v724, 1.0
        %v832 = vadd.f32 %v726, 1.0
        %v833 = vadd.f32 %v728, 1.0
        %v834 = vadd.f32 %v730, 1.0
        %v835 = vrcp.pop %v827
        %v836 = vrcp.pop %v828
        %v837 = vrcp.pop %v829
        %v838 = vrcp.pop %v830
        %v839 = vrcp.pop %v831
        %v840 = vrcp.pop %v832
        %v841 = vrcp.pop %v833
        %v842 = vrcp.pop %v834
        %v843 = vmul.f32 %v827, %v835
        %v844 = vmul.f32 %v828, %v836
        %v845 = vmul.f32 %v829, %v837
        %v846 = vmul.f32 %v830, %v838
        %v847 = vmul.f32 %v831, %v839
        %v848 = vmul.f32 %v832, %v840
        %v849 = vmul.f32 %v833, %v841
        %v850 = vmul.f32 %v834, %v842
        %v851 = vsub.f32 2.0, %v843
        %v852 = vsub.f32 2.0, %v844
        %v853 = vsub.f32 2.0, %v845
        %v854 = vsub.f32 2.0, %v846
        %v855 = vsub.f32 2.0, %v847
        %v856 = vsub.f32 2.0, %v848
        %v857 = vsub.f32 2.0, %v849
        %v858 = vsub.f32 2.0, %v850
        %v859 = vmul.f32 %v835, %v851
        %v860 = vmul.f32 %v836, %v852
        %v861 = vmul.f32 %v837, %v853
        %v862 = vmul.f32 %v838, %v854
        %v863 = vmul.f32 %v839, %v855
        %v864 = vmul.f32 %v840, %v856
        %v865 = vmul.f32 %v841, %v857
        %v866 = vmul.f32 %v842, %v858
        %v867 = vmul.f32 %v827, %v859
        %v868 = vmul.f32 %v828, %v860
        %v869 = vmul.f32 %v829, %v861
        %v870 = vmul.f32 %v830, %v862
        %v871 = vmul.f32 %v831, %v863
        %v872 = vmul.f32 %v832, %v864
        %v873 = vmul.f32 %v833, %v865
        %v874 = vmul.f32 %v834, %v866
        %v875 = vsub.f32 2.0, %v867
        %v876 = vsub.f32 2.0, %v868
        %v877 = vsub.f32 2.0, %v869
        %v878 = vsub.f32 2.0, %v870
        %v879 = vsub.f32 2.0, %v871
        %v880 = vsub.f32 2.0, %v872
        %v881 = vsub.f32 2.0, %v873
        %v882 = vsub.f32 2.0, %v874
        %v883 = vmul.f32 %v859, %v875
        %v884 = vmul.f32 %v860, %v876
        %v885 = vmul.f32 %v861, %v877
        %v886 = vmul.f32 %v862, %v878
        %v887 = vmul.f32 %v863, %v879
        %v888 = vmul.f32 %v864, %v880
        %v889 = vmul.f32 %v865, %v881
        %v890 = vmul.f32 %v866, %v882
        %vm891 = vcmp.ge.f32.partialorder %v691, 0.0
        %vm892 = vcmp.ge.f32.partialorder %v692, 0.0
        %vm893 = vcmp.ge.f32.partialorder %v693, 0.0
        %vm894 = vcmp.ge.f32.partialorder %v694, 0.0
        %vm895 = vcmp.ge.f32.partialorder %v695, 0.0
        %vm896 = vcmp.ge.f32.partialorder %v696, 0.0
        %vm897 = vcmp.ge.f32.partialorder %v697, 0.0
        %vm898 = vcmp.ge.f32.partialorder %v698, 0.0
        %v899 = vsel %vm891, %v716, 1.0
        %v900 = vsel %vm892, %v718, 1.0
        %v901 = vsel %vm893, %v720, 1.0
        %v902 = vsel %vm894, %v722, 1.0
        %v903 = vsel %vm895, %v724, 1.0
        %v904 = vsel %vm896, %v726, 1.0
        %v905 = vsel %vm897, %v728, 1.0
        %v906 = vsel %vm898, %v730, 1.0
        %v907 = vmul.f32 %v899, %v883
        %v908 = vmul.f32 %v900, %v884
        %v909 = vmul.f32 %v901, %v885
        %v910 = vmul.f32 %v902, %v886
        %v911 = vmul.f32 %v903, %v887
        %v912 = vmul.f32 %v904, %v888
        %v913 = vmul.f32 %v905, %v889
        %v914 = vmul.f32 %v906, %v890
        %v915 = vsub.f32 0.0, %v512
        %v916 = vmul.f32 %v915, 1.442695
        %v917 = vpow.pop %v916
        %v919 = vlaneseq
        %v920 = vshrl.u32 %v919, 7
        %v921 = vsub.s32 0, %v920
        %v922 = vrot.slane %v917, %v921
        %v923 = vlaneseq
        %v924 = vshrl.u32 %v923, 7
        %v925 = vsub.s32 1, %v924
        %v926 = vrot.slane %v917, %v925
        %v927 = vlaneseq
        %v928 = vshrl.u32 %v927, 7
        %v929 = vsub.s32 2, %v928
        %v930 = vrot.slane %v917, %v929
        %v931 = vlaneseq
        %v932 = vshrl.u32 %v931, 7
        %v933 = vsub.s32 3, %v932
        %v934 = vrot.slane %v917, %v933
        %v939 = vmul.f32 %v922, %v907
        %v940 = vmul.f32 %v926, %v908
        %v941 = vmul.f32 %v930, %v909
        %v942 = vmul.f32 %v934, %v910
        %v943 = vmul.f32 %v922, %v911
        %v944 = vmul.f32 %v926, %v912
        %v945 = vmul.f32 %v930, %v913
        %v946 = vmul.f32 %v934, %v914
        %v947 = vmul.f32 %v495, %v495
        %v948 = vmul.f32 %v496, %v496
        %v949 = vmul.f32 %v497, %v497
        %v950 = vmul.f32 %v498, %v498
        %v951 = vmul.f32 %v499, %v499
        %v952 = vmul.f32 %v500, %v500
        %v953 = vmul.f32 %v501, %v501
        %v954 = vmul.f32 %v502, %v502
        %v955 = vmul.f32 %v947, %v939
        %v956 = vmul.f32 %v948, %v940
        %v957 = vmul.f32 %v949, %v941
        %v958 = vmul.f32 %v950, %v942
        %v959 = vmul.f32 %v951, %v943
        %v960 = vmul.f32 %v952, %v944
        %v961 = vmul.f32 %v953, %v945
        %v962 = vmul.f32 %v954, %v946
        %v963 = vadd.f32 %v955, %v819
        %v964 = vadd.f32 %v956, %v820
        %v965 = vadd.f32 %v957, %v821
        %v966 = vadd.f32 %v958, %v822
        %v967 = vadd.f32 %v959, %v823
        %v968 = vadd.f32 %v960, %v824
        %v969 = vadd.f32 %v961, %v825
        %v970 = vadd.f32 %v962, %v826
        %v971 = vlaneseq
        %v972 = vshrl.u32 %v971, 7
        %v973 = vadd.s32 %v972, 8
        %s974 = smul.u32 %s32, 16
        %v975 = vstv %s974
        %v976 = vadd.s32 %v975, %v972
        %v977 = vadd.s32 %v975, %v973
        %vm978 = vcmp.lt.s32.totalorder %v976, 20
        %vm979 = vcmp.lt.s32.totalorder %v977, 20
        %v980 = vsel %vm978, %v963, 0.0
        %v981 = vsel %vm978, %v964, 0.0
        %v982 = vsel %vm978, %v965, 0.0
        %v983 = vsel %vm978, %v966, 0.0
        %v984 = vsel %vm979, %v967, 0.0
        %v985 = vsel %vm979, %v968, 0.0
        %v986 = vsel %vm979, %v969, 0.0
        %v987 = vsel %vm979, %v970, 0.0
        %v988 = vld [vmem:[#allocation2] sm:$0xff]
        %v989 = vld [vmem:[#allocation2 + $0x8] sm:$0xff]
        %v990 = vld [vmem:[#allocation2 + $0x10] sm:$0xff]
        %v991 = vld [vmem:[#allocation2 + $0x18] sm:$0xff]
        %v992 = vld [vmem:[#allocation2 + $0x20] sm:$0xff]
        %v993 = vld [vmem:[#allocation2 + $0x28] sm:$0xff]
        %v994 = vld [vmem:[#allocation2 + $0x30] sm:$0xff]
        %v995 = vld [vmem:[#allocation2 + $0x38] sm:$0xff]
        %v996 = vadd.f32 %v988, %v980
        %v997 = vadd.f32 %v989, %v981
        %v998 = vadd.f32 %v990, %v982
        %v999 = vadd.f32 %v991, %v983
        %v1000 = vadd.f32 %v992, %v984
        %v1001 = vadd.f32 %v993, %v985
        %v1002 = vadd.f32 %v994, %v986
        %v1003 = vadd.f32 %v995, %v987
        %1004 = vst [vmem:[#allocation2] sm:$0xff] %v996
        %1005 = vst [vmem:[#allocation2 + $0x8] sm:$0xff] %v997
        %1006 = vst [vmem:[#allocation2 + $0x10] sm:$0xff] %v998
        %1007 = vst [vmem:[#allocation2 + $0x18] sm:$0xff] %v999
        %1008 = vst [vmem:[#allocation2 + $0x20] sm:$0xff] %v1000
        %1009 = vst [vmem:[#allocation2 + $0x28] sm:$0xff] %v1001
        %1010 = vst [vmem:[#allocation2 + $0x30] sm:$0xff] %v1002
        %1011 = vst [vmem:[#allocation2 + $0x38] sm:$0xff] %v1003
        %p1012 = scmp.eq.s32.totalorder %s33, 1
        // Predicated region
        $region65: #{tpu_custom_call.1} parent=39 // pred_check
          %p1013 = pneg %p1012
        $region66: #{tpu_custom_call.1} parent=39 // pred_check_branch
          %1015 = sbr.rel (%p1013) target = $region68
        $region67: #{tpu_custom_call.1} parent=39 // pred_region
          %v1016 = vld [vmem:[#allocation2] sm:$0xff]
          %v1017 = vld [vmem:[#allocation2 + $0x8] sm:$0xff]
          %v1018 = vld [vmem:[#allocation2 + $0x10] sm:$0xff]
          %v1019 = vld [vmem:[#allocation2 + $0x18] sm:$0xff]
          %v1020 = vld [vmem:[#allocation2 + $0x20] sm:$0xff]
          %v1021 = vld [vmem:[#allocation2 + $0x28] sm:$0xff]
          %v1022 = vld [vmem:[#allocation2 + $0x30] sm:$0xff]
          %v1023 = vld [vmem:[#allocation2 + $0x38] sm:$0xff]
          %v1024 = vadd.f32 %v1016, %v1017
          %v1025 = vadd.f32 %v1024, %v1018
          %v1026 = vadd.f32 %v1025, %v1019
          %v1027 = vadd.f32 %v1026, %v1020
          %v1028 = vadd.f32 %v1027, %v1021
          %v1029 = vadd.f32 %v1028, %v1022
          %v1030 = vadd.f32 %v1029, %v1023
          %1031 = vadd.xlane.f32.xlu0 %v1030
          %v1032 = vpop.xlane.xlu0 %1031
          %v1033 = vrot.slane %v1032, 4
          %v1034 = vadd.f32 %v1032, %v1033
          %v1035 = vrot.slane %v1034, 2
          %v1036 = vadd.f32 %v1034, %v1035
          %v1037 = vrot.slane %v1036, 1
          %v1038 = vadd.f32 %v1036, %v1037
          %s1039 = vtos %v1038
          %v1040 = vstv %s1039
          %1041 = vst [vmem:[%s442] sm:$0x1] %v1040
        $region68: #{tpu_custom_call.1} parent=39 // pred_fallthru
          _
        %s1042 = sand.u32 %s186, 1
        %s1043 = scalar_lea.sflag [#allocation5], %s1042
        %s1044 = sand.u32 %s186, 1
        %s1045 = scalar_lea.vmem [#allocation12], %s1044
        // Predicated region
        $region69: #{tpu_custom_call.1} parent=39 // pred_check
          %p1046 = pneg %p196
        $region70: #{tpu_custom_call.1} parent=39 // pred_check_branch
          %1048 = sbr.rel (%p1046) target = $region72
        $region71: #{tpu_custom_call.1} parent=39 // pred_region
          %s1050 = ssub.s32 16, 16
          %1051 = vsyncadd %s1043, %s1050
          %s1052 = smul.addr %s32, 16
          %s1053 = scalar_lea.hbm %s5, %s1052
          %s1055 = sshll.u32 %s1045, 4
          %s1056 = int_to_ptr.vmem [resolvable:$true] %s1055
          %1058 = dma.vmem_to_hbm [thread:$0]  %s1056, 16, %s1053, %s1043
        $region72: #{tpu_custom_call.1} parent=39 // pred_fallthru
          _
      $region40: #{tpu_custom_call.1} parent=5 // pred_fallthru
        _
      %p1059 = scmp.le.s32.totalorder 2, %s23
      // Predicated region
      $region73: #{tpu_custom_call.1} parent=5 // pred_check
        %p1060 = pneg %p1059
      $region74: #{tpu_custom_call.1} parent=5 // pred_check_branch
        %1062 = sbr.rel (%p1060) target = $region76
      $region75: #{tpu_custom_call.1} parent=5 // pred_region
        %s1063 = ssub.s32 %s23, 2
        // Predicated region
        $region77: #{tpu_custom_call.1} parent=75 // pred_check
          %p1064 = pneg %p202
        $region78: #{tpu_custom_call.1} parent=75 // pred_check_branch
          %1066 = sbr.rel (%p1064) target = $region80
        $region79: #{tpu_custom_call.1} parent=75 // pred_region
          %s1067 = sand.u32 %s187, 1
          %s1068 = scalar_lea.sflag [#allocation5], %s1067
          %s1069 = sand.u32 %s187, 1
          %s1070 = scalar_lea.vmem [#allocation12], %s1069
          %1071 = dma.done %s1068, 16
        $region80: #{tpu_custom_call.1} parent=75 // pred_fallthru
          _
      $region76: #{tpu_custom_call.1} parent=5 // pred_fallthru
        _
    $region6: #{tpu_custom_call.1} parent=1 // loop_footer
      %s27 = sadd.s32 1, %s23
    $region7: #{tpu_custom_call.1} parent=1 // loop_footer_branch
      %22 = sbr.rel target = $region3
    $region8: #{tpu_custom_call.1} parent=1 // loop_exit
      _
    %1072 = vsyncpa [#allocation4], 1
    %s1073 = scalar_lea.sflag [#allocation4], 1
    %1074 = vsyncpa %s1073, 1
    %1075 = vsyncpa [#allocation7], 1
    %s1076 = scalar_lea.sflag [#allocation7], 1
    %1077 = vsyncpa %s1076, 1
    %1078 = vsyncpa [#allocation10], 1
    %s1079 = scalar_lea.sflag [#allocation10], 1
    %1080 = vsyncpa %s1079, 1
    %1081 = vsyncpa [#allocation5], 1
    %s1082 = scalar_lea.sflag [#allocation5], 1
    %1083 = vsyncpa %s1082, 1

</llo_original>
